<compile_context>
chip_gen: v7x
topology: tpu7x:2x2x1
jax: 0.10.0
libtpu: 0.0.40
codegen_flags: <defaults>
</compile_context>

<pallas_src>
import functools

import jax
import jax.numpy as jnp
from jax.experimental import pallas as pl
from jax.experimental.pallas import tpu as pltpu

input_dim = 20
output_dim = 10

LANE = 128          # TPU lane width — output N padded to a multiple of this
SUBLANE = 16        # bf16 sublane packing — batch padded to a multiple of this
MAX_TILE_B = 512    # batch tile (rows per grid step); multiple of SUBLANE


def _round_up(x, m):
    return ((x + m - 1) // m) * m


def expert_kernel(x_ref, w_ref, b_ref, o_ref):
    # x_ref: (TILE_B, in_dim)   bf16 VMEM (batch tile)
    # w_ref: (in_dim, n_pad)    bf16 VMEM (pre-transposed, zero-padded cols, resident)
    # b_ref: (1, n_pad)         f32  VMEM (zero-padded, resident)
    # o_ref: (TILE_B, n_pad)    f32  VMEM (lane-dense: n_pad % 128 == 0)
    acc = jnp.dot(x_ref[...], w_ref[...], preferred_element_type=jnp.float32)
    acc = acc + b_ref[...]                      # broadcast (1, n_pad) over rows
    o_ref[...] = jnp.maximum(acc, 0.0).astype(o_ref.dtype)


def prepare_expert_params(weight, bias):
    """One-time parameter prep (hoisted out of the forward hot path).

    weight: (output_dim, input_dim) f32, bias: (output_dim,) f32
    Returns (w_t_padded (in, n_pad) bf16, b_padded (1, n_pad) f32, out_dim).
    Padding columns are zero, so ReLU(0 + 0) = 0 in the padded region and the
    valid columns are sliced off in the wrapper.
    """
    out_dim, in_dim = weight.shape
    n_pad = max(LANE, _round_up(out_dim, LANE))
    w_t_padded = (
        jnp.zeros((in_dim, n_pad), jnp.bfloat16)
        .at[:, :out_dim]
        .set(weight.T.astype(jnp.bfloat16))
    )
    b_padded = (
        jnp.zeros((1, n_pad), jnp.float32)
        .at[:, :out_dim]
        .set(bias.astype(jnp.float32))
    )
    return w_t_padded, b_padded, out_dim


@functools.partial(jax.jit, static_argnums=(3,))
def expert_forward(x, w_t_padded, b_padded, out_dim):
    """x: (B, input_dim) f32. Returns (B, out_dim) = ReLU(x @ W^T + b)."""
    B, in_dim = x.shape
    n_pad = w_t_padded.shape[1]

    # Batch tiling: multiple of 16 (bf16 sublanes), capped at MAX_TILE_B.
    tile_b = min(MAX_TILE_B, _round_up(B, SUBLANE))
    b_pad = _round_up(B, tile_b)

    x_bf = x.astype(jnp.bfloat16)
    if b_pad != B:
        x_bf = jnp.pad(x_bf, ((0, b_pad - B), (0, 0)))

    grid = (pl.cdiv(b_pad, tile_b),)

    out_padded = pl.pallas_call(
        expert_kernel,
        out_shape=jax.ShapeDtypeStruct((b_pad, n_pad), jnp.float32),
        grid=grid,
        in_specs=[
            # x: tiled along batch.
            pl.BlockSpec((tile_b, in_dim), lambda i: (i, 0)),
            # Weight / bias: full-extent, resident in VMEM across grid steps.
            pl.BlockSpec((in_dim, n_pad), lambda i: (0, 0)),
            pl.BlockSpec((1, n_pad), lambda i: (0, 0)),
        ],
        out_specs=pl.BlockSpec((tile_b, n_pad), lambda i: (i, 0)),
        compiler_params=pltpu.CompilerParams(
            dimension_semantics=("parallel",),   # megacore split on v7x
        ),
        cost_estimate=pl.CostEstimate(
            # Logical (unpadded) work, per review: do not inflate with n_pad.
            flops=2 * B * in_dim * out_dim,
            transcendentals=0,
            bytes_accessed=(
                2 * B * in_dim            # x, bf16
                + 2 * in_dim * out_dim    # weight, bf16
                + 4 * out_dim             # bias, f32
                + 4 * B * out_dim         # output, f32
            ),
        ),
    )(x_bf, w_t_padded, b_padded)

    # Slice back to the logical output shape; fuses under jit.
    return out_padded[:B, :out_dim]


if __name__ == "__main__":
    key = jax.random.PRNGKey(0)
    k_x, k_w, k_b, k_x2 = jax.random.split(key, 4)

    weight = jax.random.normal(k_w, (output_dim, input_dim), dtype=jnp.float32) * 0.1
    bias = jax.random.normal(k_b, (output_dim,), dtype=jnp.float32) * 0.1

    # One-time parameter preparation (transpose + lane-dense padding + bf16 cast).
    w_t_padded, b_padded, odim = prepare_expert_params(weight, bias)

    # Case 1: small batch (matches the original module usage); single grid step.
    batch = 8
    x = jax.random.normal(k_x, (batch, input_dim), dtype=jnp.float32)
    out = jax.block_until_ready(expert_forward(x, w_t_padded, b_padded, odim))
    ref = jnp.maximum(x @ weight.T + bias, 0.0)
    assert out.shape == (batch, output_dim)
    # bf16 matmul inputs (K=20): not bit-exact vs f32 reference, loose tolerance.
    assert jnp.allclose(out, ref, atol=3e-2, rtol=3e-2), float(
        jnp.max(jnp.abs(out - ref))
    )

    # Case 2: larger ragged batch; exercises multi-step grid + batch padding.
    batch2 = 1030
    x2 = jax.random.normal(k_x2, (batch2, input_dim), dtype=jnp.float32)
    out2 = jax.block_until_ready(expert_forward(x2, w_t_padded, b_padded, odim))
    ref2 = jnp.maximum(x2 @ weight.T + bias, 0.0)
    assert out2.shape == (batch2, output_dim)
    assert jnp.allclose(out2, ref2, atol=3e-2, rtol=3e-2), float(
        jnp.max(jnp.abs(out2 - ref2))
    )

    print("KERNEL_OK")
</pallas_src>

<mosaic_0001>
module attributes {stable_mosaic.version = 11 : i64} {
  func.func @expert_kernel(%arg0: i32, %arg1: memref<16x20xbf16, #tpu.memory_space<vmem>>, %arg2: memref<20x128xbf16, #tpu.memory_space<vmem>>, %arg3: memref<1x128xf32, #tpu.memory_space<vmem>>, %arg4: memref<16x128xf32, #tpu.memory_space<vmem>>) attributes {dimension_semantics = [#tpu.dimension_semantics<parallel>], iteration_bounds = array<i64: 1>, scalar_prefetch = 0 : i64, scratch_operands = 0 : i64, tpu.core_type = #tpu.core_type<tc>, window_params = [{transform_indices = @transform_0, window_bounds = array<i64: 16, 20>}, {pipeline_mode = #tpu.pipeline_mode<synchronous>, transform_indices = @transform_1, window_bounds = array<i64: 20, 128>}, {pipeline_mode = #tpu.pipeline_mode<synchronous>, transform_indices = @transform_2, window_bounds = array<i64: 1, 128>}, {transform_indices = @transform_3, window_bounds = array<i64: 16, 128>}]} {
    %c0 = arith.constant 0 : index
    %c0_0 = arith.constant 0 : index
    %0 = vector.load %arg1[%c0, %c0_0] : memref<16x20xbf16, #tpu.memory_space<vmem>>, vector<16x20xbf16>
    %c0_1 = arith.constant 0 : index
    %c0_2 = arith.constant 0 : index
    %1 = vector.load %arg2[%c0_1, %c0_2] : memref<20x128xbf16, #tpu.memory_space<vmem>>, vector<20x128xbf16>
    %cst = arith.constant dense<0.000000e+00> : vector<16x128xf32>
    %2 = tpu.matmul %0, %1, %cst {dimension_numbers = #tpu.dot_dimension_numbers<[1], [0], [0], [1], [0, 0, 1, 1], [], []>} : vector<16x20xbf16>, vector<20x128xbf16>, vector<16x128xf32> -> vector<16x128xf32>
    %c0_3 = arith.constant 0 : index
    %c0_4 = arith.constant 0 : index
    %3 = vector.load %arg3[%c0_3, %c0_4] : memref<1x128xf32, #tpu.memory_space<vmem>>, vector<1x128xf32>
    %4 = vector.broadcast %3 : vector<1x128xf32> to vector<16x128xf32>
    %5 = arith.addf %2, %4 : vector<16x128xf32>
    %cst_5 = arith.constant 0.000000e+00 : f32
    %6 = vector.broadcast %cst_5 : f32 to vector<16x128xf32>
    %7 = arith.maximumf %5, %6 : vector<16x128xf32>
    %c0_6 = arith.constant 0 : index
    %c0_7 = arith.constant 0 : index
    %8 = vector.load %arg4[%c0_6, %c0_7] : memref<16x128xf32, #tpu.memory_space<vmem>>, vector<16x128xf32>
    tpu.vector_store %arg4[%c0_6, %c0_7], %7 {strides = array<i32>} : memref<16x128xf32, #tpu.memory_space<vmem>>, vector<16x128xf32>,
    return
  }
  func.func @transform_0(%arg0: i32) -> (i32, i32) {
    %c0_i32 = arith.constant 0 : i32
    %c0_i32_0 = arith.constant 0 : i32
    return %arg0, %c0_i32 : i32, i32
  }
  func.func @transform_1(%arg0: i32) -> (i32, i32) {
    %c0_i32 = arith.constant 0 : i32
    %c0_i32_0 = arith.constant 0 : i32
    %c0_i32_1 = arith.constant 0 : i32
    return %c0_i32, %c0_i32_0 : i32, i32
  }
  func.func @transform_2(%arg0: i32) -> (i32, i32) {
    %c0_i32 = arith.constant 0 : i32
    %c0_i32_0 = arith.constant 0 : i32
    %c0_i32_1 = arith.constant 0 : i32
    return %c0_i32, %c0_i32_0 : i32, i32
  }
  func.func @transform_3(%arg0: i32) -> (i32, i32) {
    %c0_i32 = arith.constant 0 : i32
    %c0_i32_0 = arith.constant 0 : i32
    return %arg0, %c0_i32 : i32, i32
  }
}

</mosaic_0001>

<llo_original>
// kernel: expert_forward.1
$region0: #{expert_forward.1}
  #allocation0 [shape = 'u32[]', space=smem, size = 0x4, offset = 0x4, fixed_abs, tag = 'smem constant byte address 0x4 - core index']
  #allocation1 [shape = 'u32[144,128]{1,0:T(1,128)}', space=vmem, size = 0x12000, scoped, tag = 'internal scratch']
  %s0 = inlined_call_operand.vmem [shape: bf16[16,20], index: 0, kind: input, shape index: {}]
  %s1 = inlined_call_operand.vmem [shape: bf16[20,128], index: 1, kind: input, shape index: {}]
  %s2 = inlined_call_operand.vmem [shape: f32[1,128], index: 2, kind: input, shape index: {}]
  %s3 = inlined_call_operand.vmem [shape: f32[16,128], index: 3, kind: output, shape index: {}]
  %s4 = sld [smem:[#allocation0]]
  $region22: #{expert_forward.1} parent=0
    _
  %s6 = ssub.s32 1, %s4
  %s7 = scalar_select 0, %s6, %s4
  // Predicated region
  $region2: #{expert_forward.1} parent=0 // pred_check
    _
  $region3: #{expert_forward.1} parent=0 // pred_check_branch
    %9 = sbr.rel (0) target = $region5
  $region4: #{expert_forward.1} parent=0 // pred_region
    _
  $region5: #{expert_forward.1} parent=0 // pred_fallthru
    _
  // Predicated region
  $region6: #{expert_forward.1} parent=0 // pred_check
    _
  $region7: #{expert_forward.1} parent=0 // pred_check_branch
    %11 = sbr.rel (0) target = $region9
  $region8: #{expert_forward.1} parent=0 // pred_region
    _
  $region9: #{expert_forward.1} parent=0 // pred_fallthru
    _
  // Predicated region
  $region10: #{expert_forward.1} parent=0 // pred_check
    _
  $region11: #{expert_forward.1} parent=0 // pred_check_branch
    %13 = sbr.rel (0) target = $region13
  $region12: #{expert_forward.1} parent=0 // pred_region
    _
  $region13: #{expert_forward.1} parent=0 // pred_fallthru
    _
  %v15 = vld [vmem:[%s0] sm:$0xf]
  %v16 = vld [vmem:[%s0 + $0x4] sm:$0xf]
  %v17 = vld [vmem:[%s1] sm:$0xf]
  %v18 = vld [vmem:[%s1 + $0x4] sm:$0xf]
  %v19 = vld [vmem:[%s1 + $0x8] sm:$0x3]
  %v20 = vld [vmem:[%s2] sm:$0x1]
  %v22 = vlaneseq
  %v23 = vshrl.u32 %v22, 7
  %v24 = vsub.s32 0, %v23
  %v25 = vrot.slane %v20, %v24
  %v29 = vunpack.c.l.b16 %v15
  %v30 = vunpack.c.l.b16 %v16
  %v31 = vpack.c.b16 %v30, %v29
  %v35 = vunpack.c.l.b16 %v17
  %v36 = vunpack.c.l.b16 %v18
  %v37 = vunpack.c.l.b16 %v19
  %v38 = vpack.c.b16 %v36, %v35
  %v39 = vpack.c.b16 %v37, %v37
  %vm41 = vcmask 162816
  %v43 = vsel %vm41, %v31, 0
  %vm45 = vcmask 1041408
  %v47 = vsel %vm45, %v39, 0
  %49 = vmatprep.subr.bf16.mxu0 0
  %50 = vmatpush1.bf16.msra.mxu0 %v38
  %51 = vmatprep.subr.bf16.mxu0 0
  %52 = vmatpush1.bf16.msra.mxu0 %v47
  %53 = vmatprep.subr.bf16.mxu0 0
  %54 = vmatpush1.bf16.msra.mxu0 0
  %55 = vmatprep.subr.bf16.mxu0 0
  %56 = vmatpush1.bf16.msra.mxu0 0
  %57 = vmatprep.subr.bf16.mxu0 0
  %58 = vmatpush1.bf16.msra.mxu0 0
  %59 = vmatprep.subr.bf16.mxu0 0
  %60 = vmatpush1.bf16.msra.mxu0 0
  %61 = vmatprep.subr.bf16.mxu0 0
  %62 = vmatpush1.bf16.msra.mxu0 0
  %63 = vmatprep.subr.bf16.mxu0 0
  %64 = vmatpush1.bf16.msra.mxu0 0
  %65 = vmatprep.subr.bf16.mxu0 0
  %66 = vmatpush1.bf16.msra.mxu0 0
  %67 = vmatprep.subr.bf16.mxu0 0
  %68 = vmatpush1.bf16.msra.mxu0 0
  %69 = vmatprep.subr.bf16.mxu0 0
  %70 = vmatpush1.bf16.msra.mxu0 0
  %71 = vmatprep.subr.bf16.mxu0 0
  %72 = vmatpush1.bf16.msra.mxu0 0
  %73 = vmatprep.subr.bf16.mxu0 0
  %74 = vmatpush1.bf16.msra.mxu0 0
  %75 = vmatprep.subr.bf16.mxu0 0
  %76 = vmatpush1.bf16.msra.mxu0 0
  %77 = vmatprep.subr.bf16.mxu0 0
  %78 = vmatpush1.bf16.msra.mxu0 0
  %79 = vmatprep.subr.bf16.mxu0 0
  %80 = vmatpush1.bf16.msra.mxu0 0
  %81 = vmatprep.mubr.bf16.mxu0 0
  %82 = vmatmul.mubr.bf16.gmra.mrb[0].mxu0 %v43
  %v83 = vpop.f32.mrb[0].mxu0
  %v84 = vadd.f32 %v25, %v83
  %v85 = vpop.f32.mrb[0].mxu0
  %v86 = vpop.f32.mrb[0].mxu0
  %v87 = vadd.f32 %v25, %v86
  %v88 = vpop.f32.mrb[0].mxu0
  %89 = vdwg.mxu0
  %v90 = vmax.f32 %v84, 0.0
  %v91 = vmax.f32 %v87, 0.0
  %92 = vst [vmem:[%s3] sm:$0xff] %v90
  %93 = vst [vmem:[%s3 + $0x8] sm:$0xff] %v91
  // Predicated region
  $region14: #{expert_forward.1} parent=0 // pred_check
    _
  $region15: #{expert_forward.1} parent=0 // pred_check_branch
    %95 = sbr.rel (0) target = $region17
  $region16: #{expert_forward.1} parent=0 // pred_region
    _
  $region17: #{expert_forward.1} parent=0 // pred_fallthru
    _
  // Predicated region
  $region18: #{expert_forward.1} parent=0 // pred_check
    _
  $region19: #{expert_forward.1} parent=0 // pred_check_branch
    %97 = sbr.rel (0) target = $region21
  $region20: #{expert_forward.1} parent=0 // pred_region
    _
  $region21: #{expert_forward.1} parent=0 // pred_fallthru
    _

</llo_original>
